<compile_context>
chip_gen: v7x
topology: tpu7x:2x2x1
jax: 0.10.0
libtpu: 0.0.40
codegen_flags: <defaults>
</compile_context>

<pallas_src>
import functools

import jax
import jax.numpy as jnp
from jax.experimental import pallas as pl
from jax.experimental.pallas import tpu as pltpu


def _block_kernel(x_ref, w1_ref, b1_ref, w2_ref, b2_ref, out_ref, *, mxu_dtype):
    # x_ref   : (nb, C, L) input dtype (f32 or bf16)
    # w1_ref  : (3, C, C) mxu_dtype   per-tap weights, k = 0, 1, 2
    # b1_ref  : (C, 1) f32
    # w2_ref  : (3, C, C) mxu_dtype
    # b2_ref  : (C, 1) f32
    # out_ref : (nb, C, L) output dtype
    nb, C, L = x_ref.shape

    # Row-invariant boundary masks (conv padding=1 => zero column outside [0, L)).
    # Shape (1, L): broadcast inside the where, computed once per grid step.
    col = jax.lax.broadcasted_iota(jnp.int32, (1, L), 1)
    first = col == 0          # column 0   -> zero for the k=0 tap (x[l-1])
    last = col == (L - 1)     # column L-1 -> zero for the k=2 tap (x[l+1])

    # Grid-invariant operands, loaded once per grid step.
    w1_0, w1_1, w1_2 = w1_ref[0], w1_ref[1], w1_ref[2]
    w2_0, w2_1, w2_2 = w2_ref[0], w2_ref[1], w2_ref[2]
    b1 = b1_ref[...]
    b2 = b2_ref[...]

    def conv3(v, wk0, wk1, wk2):
        # v: (C, L) float. Shifted taps are built just-in-time so only one
        # shifted copy is live alongside the f32 accumulator. Shift/mask run in
        # f32 (XLU roll + VPU select); the bf16 cast happens right before each
        # MXU matmul; accumulation is f32.
        acc = jnp.dot(wk1, v.astype(mxu_dtype),
                      preferred_element_type=jnp.float32)
        t0 = jnp.where(first, 0.0, pltpu.roll(v, shift=1, axis=1))      # v[:, l-1]
        acc = acc + jnp.dot(wk0, t0.astype(mxu_dtype),
                            preferred_element_type=jnp.float32)
        t2 = jnp.where(last, 0.0, pltpu.roll(v, shift=L - 1, axis=1))   # v[:, l+1]
        acc = acc + jnp.dot(wk2, t2.astype(mxu_dtype),
                            preferred_element_type=jnp.float32)
        return acc                                                      # (C, L) f32

    # nb is a small static batch tile (capped in the wrapper), so a static
    # Python loop over per-batch 2-D matmuls is fine.
    for i in range(nb):
        x = x_ref[i]                                           # (C, L)
        x32 = x.astype(jnp.float32)
        h = jnp.maximum(conv3(x, w1_0, w1_1, w1_2) + b1, 0.0)  # relu(conv1(x)+b1)
        y = conv3(h, w2_0, w2_1, w2_2)                         # conv2(h) (no bias yet)
        out_ref[i] = jnp.maximum(x32 + y + b2, 0.0).astype(out_ref.dtype)


def _vmem_capacity_bytes():
    """Physical VMEM of the attached TPU; conservative (v7x-sized) fallback."""
    try:
        info = pltpu.get_tpu_info()
        cap = getattr(info, "vmem_capacity_bytes", None)
        if cap:
            return int(cap)
    except Exception:
        pass
    return 64 * 1024 * 1024


def _pick_batch_tile(N, C, L, bytes_per_elem, budget_bytes, max_nb=8):
    """Largest batch tile nb (dividing N, <= max_nb) whose in+out block fits the
    budget, while keeping >= 2 grid steps when N >= 2 (v7x has 2 TensorCores).
    Falls back to the smallest tile (1), never to N."""
    best = 1
    for nb in range(1, min(N, max_nb) + 1):
        if N % nb:
            continue
        if N >= 2 and (N // nb) < 2:
            continue
        if nb * bytes_per_elem <= budget_bytes:
            best = nb
    return best


def resnet1d_basic_block(x, w1, b1, w2, b2, *, batch_tile=None,
                         mxu_dtype=jnp.bfloat16, out_dtype=None):
    """x: (N, C, L); w*: (C_out, C_in, 3) (PyTorch layout); b*: (C,).

    Returns (N, C, L) = relu(x + conv2(relu(conv1(x)))), dtype = x.dtype unless
    out_dtype is given (pass bf16 x / out_dtype for the low-HBM-traffic path).
    """
    N, C, L = x.shape
    assert w1.shape == (C, C, 3) and w2.shape == (C, C, 3)
    out_dtype = x.dtype if out_dtype is None else out_dtype

    # Per-tap weights: (C_out, C_in, 3) -> (3, C_out, C_in); MXU dtype (bf16 by
    # default, pass jnp.float32 for a full-precision fallback).
    w1t = jnp.transpose(w1, (2, 0, 1)).astype(mxu_dtype)
    w2t = jnp.transpose(w2, (2, 0, 1)).astype(mxu_dtype)
    b1c = b1.reshape(C, 1).astype(jnp.float32)
    b2c = b2.reshape(C, 1).astype(jnp.float32)

    x_item = jnp.dtype(x.dtype).itemsize
    o_item = jnp.dtype(out_dtype).itemsize
    w_item = jnp.dtype(mxu_dtype).itemsize

    cap = _vmem_capacity_bytes()
    block_budget = cap // 16                      # ~4 MiB on v7x, ~8 MiB on v5e/v6e
    bytes_per_elem = C * L * (x_item + o_item)    # one batch element, in + out

    nb = batch_tile if batch_tile is not None else _pick_batch_tile(
        N, C, L, bytes_per_elem, block_budget)
    assert N % nb == 0
    n_tiles = N // nb

    # VMEM estimate: double-buffered in/out blocks + double-buffered weights /
    # biases + in-kernel temporaries (taps, f32 accumulators, h, x32: ~6 f32
    # (C, L) planes per in-flight batch element) + slack.
    blk_bytes = nb * C * L * (x_item + o_item)
    w_bytes = 2 * 3 * C * C * w_item + 2 * C * 4
    tmp_bytes = nb * 6 * C * L * 4
    est = 2 * blk_bytes + 2 * w_bytes + tmp_bytes + (1 << 20)
    vmem_limit = int(min(max(est, 32 * 1024 * 1024), int(cap * 0.75)))

    kernel = functools.partial(_block_kernel, mxu_dtype=mxu_dtype)

    return pl.pallas_call(
        kernel,
        out_shape=jax.ShapeDtypeStruct((N, C, L), out_dtype),
        grid_spec=pltpu.PrefetchScalarGridSpec(
            num_scalar_prefetch=0,
            grid=(n_tiles,),
            in_specs=[
                pl.BlockSpec((nb, C, L), lambda i: (i, 0, 0)),   # x (batch-tiled)
                pl.BlockSpec((3, C, C), lambda i: (0, 0, 0)),    # w1 (grid-invariant)
                pl.BlockSpec((C, 1), lambda i: (0, 0)),          # b1
                pl.BlockSpec((3, C, C), lambda i: (0, 0, 0)),    # w2
                pl.BlockSpec((C, 1), lambda i: (0, 0)),          # b2
            ],
            out_specs=pl.BlockSpec((nb, C, L), lambda i: (i, 0, 0)),
        ),
        compiler_params=pltpu.CompilerParams(
            dimension_semantics=("parallel",),
            vmem_limit_bytes=vmem_limit,
        ),
    )(x, w1t, b1c, w2t, b2c)


def _reference_forward(x, w1, b1, w2, b2):
    """Pure-JAX f32 reference mirroring the PyTorch module (eval, default args)."""
    def conv(inp, w, b):
        y = jax.lax.conv_general_dilated(
            inp, w, window_strides=(1,), padding=((1, 1),),
            dimension_numbers=("NCH", "OIH", "NCH"),
        )
        return y + b[None, :, None]

    h = jnp.maximum(conv(x, w1, b1), 0.0)
    return jnp.maximum(x + conv(h, w2, b2), 0.0)


if __name__ == "__main__":
    # Small shapes: batch=2, channels=8, length=16 (stride=1, in==out channels
    # as required by the residual add in the reference module).
    N, C, L = 2, 8, 16
    key = jax.random.PRNGKey(0)
    kx, kw1, kb1, kw2, kb2 = jax.random.split(key, 5)

    x = jax.random.normal(kx, (N, C, L), dtype=jnp.float32)

    # PyTorch Conv1d default init: U(-bound, bound), bound = 1/sqrt(C_in * k).
    bound = 1.0 / float(jnp.sqrt(jnp.float32(C * 3)))
    w1 = jax.random.uniform(kw1, (C, C, 3), jnp.float32, -bound, bound)
    b1 = jax.random.uniform(kb1, (C,), jnp.float32, -bound, bound)
    w2 = jax.random.uniform(kw2, (C, C, 3), jnp.float32, -bound, bound)
    b2 = jax.random.uniform(kb2, (C,), jnp.float32, -bound, bound)

    out = jax.block_until_ready(resnet1d_basic_block(x, w1, b1, w2, b2))
    ref = _reference_forward(x, w1, b1, w2, b2)

    assert out.shape == (N, C, L)
    max_err = float(jnp.max(jnp.abs(out - ref)))
    # Tolerance accounts for bf16 MXU inputs (f32 accumulation / bias / residual).
    assert max_err < 5e-2, f"mismatch vs reference: max abs err = {max_err}"

    print("KERNEL_OK")
</pallas_src>

<mosaic_0001>
module attributes {stable_mosaic.version = 11 : i64} {
  func.func @_block_kernel(%arg0: i32, %arg1: memref<1x8x16xf32, #tpu.memory_space<vmem>>, %arg2: memref<3x8x8xbf16, #tpu.memory_space<vmem>>, %arg3: memref<8x1xf32, #tpu.memory_space<vmem>>, %arg4: memref<3x8x8xbf16, #tpu.memory_space<vmem>>, %arg5: memref<8x1xf32, #tpu.memory_space<vmem>>, %arg6: memref<1x8x16xf32, #tpu.memory_space<vmem>>) attributes {dimension_semantics = [#tpu.dimension_semantics<parallel>], iteration_bounds = array<i64: 2>, scalar_prefetch = 0 : i64, scratch_operands = 0 : i64, tpu.core_type = #tpu.core_type<tc>, window_params = [{transform_indices = @transform_0, window_bounds = array<i64: 1, 8, 16>}, {pipeline_mode = #tpu.pipeline_mode<synchronous>, transform_indices = @transform_1, window_bounds = array<i64: 3, 8, 8>}, {pipeline_mode = #tpu.pipeline_mode<synchronous>, transform_indices = @transform_2, window_bounds = array<i64: 8, 1>}, {pipeline_mode = #tpu.pipeline_mode<synchronous>, transform_indices = @transform_3, window_bounds = array<i64: 3, 8, 8>}, {pipeline_mode = #tpu.pipeline_mode<synchronous>, transform_indices = @transform_4, window_bounds = array<i64: 8, 1>}, {transform_indices = @transform_5, window_bounds = array<i64: 1, 8, 16>}]} {
    %0 = tpu.iota {dimensions = array<i32: 1>} : vector<1x16xi32>
    %c0_i32 = arith.constant 0 : i32
    %1 = vector.broadcast %c0_i32 : i32 to vector<1x16xi32>
    %2 = arith.cmpi eq, %0, %1 : vector<1x16xi32>
    %c15_i32 = arith.constant 15 : i32
    %3 = vector.broadcast %c15_i32 : i32 to vector<1x16xi32>
    %4 = arith.cmpi eq, %0, %3 : vector<1x16xi32>
    %c0 = arith.constant 0 : index
    %c0_0 = arith.constant 0 : index
    %c0_1 = arith.constant 0 : index
    %5 = vector.load %arg2[%c0, %c0_0, %c0_1] : memref<3x8x8xbf16, #tpu.memory_space<vmem>>, vector<1x8x8xbf16>
    %6 = vector.shape_cast %5 : vector<1x8x8xbf16> to vector<8x8xbf16>
    %c1 = arith.constant 1 : index
    %c0_2 = arith.constant 0 : index
    %c0_3 = arith.constant 0 : index
    %7 = vector.load %arg2[%c1, %c0_2, %c0_3] : memref<3x8x8xbf16, #tpu.memory_space<vmem>>, vector<1x8x8xbf16>
    %8 = vector.shape_cast %7 : vector<1x8x8xbf16> to vector<8x8xbf16>
    %c2 = arith.constant 2 : index
    %c0_4 = arith.constant 0 : index
    %c0_5 = arith.constant 0 : index
    %9 = vector.load %arg2[%c2, %c0_4, %c0_5] : memref<3x8x8xbf16, #tpu.memory_space<vmem>>, vector<1x8x8xbf16>
    %10 = vector.shape_cast %9 : vector<1x8x8xbf16> to vector<8x8xbf16>
    %c0_6 = arith.constant 0 : index
    %c0_7 = arith.constant 0 : index
    %c0_8 = arith.constant 0 : index
    %11 = vector.load %arg4[%c0_6, %c0_7, %c0_8] : memref<3x8x8xbf16, #tpu.memory_space<vmem>>, vector<1x8x8xbf16>
    %12 = vector.shape_cast %11 : vector<1x8x8xbf16> to vector<8x8xbf16>
    %c1_9 = arith.constant 1 : index
    %c0_10 = arith.constant 0 : index
    %c0_11 = arith.constant 0 : index
    %13 = vector.load %arg4[%c1_9, %c0_10, %c0_11] : memref<3x8x8xbf16, #tpu.memory_space<vmem>>, vector<1x8x8xbf16>
    %14 = vector.shape_cast %13 : vector<1x8x8xbf16> to vector<8x8xbf16>
    %c2_12 = arith.constant 2 : index
    %c0_13 = arith.constant 0 : index
    %c0_14 = arith.constant 0 : index
    %15 = vector.load %arg4[%c2_12, %c0_13, %c0_14] : memref<3x8x8xbf16, #tpu.memory_space<vmem>>, vector<1x8x8xbf16>
    %16 = vector.shape_cast %15 : vector<1x8x8xbf16> to vector<8x8xbf16>
    %c0_15 = arith.constant 0 : index
    %c0_16 = arith.constant 0 : index
    %17 = vector.load %arg3[%c0_15, %c0_16] : memref<8x1xf32, #tpu.memory_space<vmem>>, vector<8x1xf32>
    %c0_17 = arith.constant 0 : index
    %c0_18 = arith.constant 0 : index
    %18 = vector.load %arg5[%c0_17, %c0_18] : memref<8x1xf32, #tpu.memory_space<vmem>>, vector<8x1xf32>
    %c0_19 = arith.constant 0 : index
    %c0_20 = arith.constant 0 : index
    %c0_21 = arith.constant 0 : index
    %19 = vector.load %arg1[%c0_19, %c0_20, %c0_21] : memref<1x8x16xf32, #tpu.memory_space<vmem>>, vector<1x8x16xf32>
    %20 = vector.shape_cast %19 : vector<1x8x16xf32> to vector<8x16xf32>
    %21 = arith.truncf %20 : vector<8x16xf32> to vector<8x16xbf16>
    %cst = arith.constant dense<0.000000e+00> : vector<8x16xf32>
    %22 = tpu.matmul %8, %21, %cst {dimension_numbers = #tpu.dot_dimension_numbers<[1], [0], [0], [1], [0, 0, 1, 1], [], []>} : vector<8x8xbf16>, vector<8x16xbf16>, vector<8x16xf32> -> vector<8x16xf32>
    %c1_i32 = arith.constant 1 : i32
    %23 = tpu.dynamic_rotate %20 by %c1_i32 dim 1 : vector<8x16xf32>, i32 -> vector<8x16xf32>
    %cst_22 = arith.constant 0.000000e+00 : f32
    %24 = vector.shape_cast %2 : vector<1x16xi1> to vector<1x16xi1>
    %25 = vector.broadcast %24 : vector<1x16xi1> to vector<8x16xi1>
    %26 = vector.broadcast %cst_22 : f32 to vector<8x16xf32>
    %27 = arith.select %25, %26, %23 : vector<8x16xi1>, vector<8x16xf32>
    %28 = arith.truncf %27 : vector<8x16xf32> to vector<8x16xbf16>
    %cst_23 = arith.constant dense<0.000000e+00> : vector<8x16xf32>
    %29 = tpu.matmul %6, %28, %cst_23 {dimension_numbers = #tpu.dot_dimension_numbers<[1], [0], [0], [1], [0, 0, 1, 1], [], []>} : vector<8x8xbf16>, vector<8x16xbf16>, vector<8x16xf32> -> vector<8x16xf32>
    %30 = arith.addf %22, %29 : vector<8x16xf32>
    %c15_i32_24 = arith.constant 15 : i32
    %31 = tpu.dynamic_rotate %20 by %c15_i32_24 dim 1 : vector<8x16xf32>, i32 -> vector<8x16xf32>
    %cst_25 = arith.constant 0.000000e+00 : f32
    %32 = vector.shape_cast %4 : vector<1x16xi1> to vector<1x16xi1>
    %33 = vector.broadcast %32 : vector<1x16xi1> to vector<8x16xi1>
    %34 = vector.broadcast %cst_25 : f32 to vector<8x16xf32>
    %35 = arith.select %33, %34, %31 : vector<8x16xi1>, vector<8x16xf32>
    %36 = arith.truncf %35 : vector<8x16xf32> to vector<8x16xbf16>
    %cst_26 = arith.constant dense<0.000000e+00> : vector<8x16xf32>
    %37 = tpu.matmul %10, %36, %cst_26 {dimension_numbers = #tpu.dot_dimension_numbers<[1], [0], [0], [1], [0, 0, 1, 1], [], []>} : vector<8x8xbf16>, vector<8x16xbf16>, vector<8x16xf32> -> vector<8x16xf32>
    %38 = arith.addf %30, %37 : vector<8x16xf32>
    %39 = vector.broadcast %17 : vector<8x1xf32> to vector<8x16xf32>
    %40 = arith.addf %38, %39 : vector<8x16xf32>
    %cst_27 = arith.constant 0.000000e+00 : f32
    %41 = vector.broadcast %cst_27 : f32 to vector<8x16xf32>
    %42 = arith.maximumf %40, %41 : vector<8x16xf32>
    %43 = arith.truncf %42 : vector<8x16xf32> to vector<8x16xbf16>
    %cst_28 = arith.constant dense<0.000000e+00> : vector<8x16xf32>
    %44 = tpu.matmul %14, %43, %cst_28 {dimension_numbers = #tpu.dot_dimension_numbers<[1], [0], [0], [1], [0, 0, 1, 1], [], []>} : vector<8x8xbf16>, vector<8x16xbf16>, vector<8x16xf32> -> vector<8x16xf32>
    %c1_i32_29 = arith.constant 1 : i32
    %45 = tpu.dynamic_rotate %42 by %c1_i32_29 dim 1 : vector<8x16xf32>, i32 -> vector<8x16xf32>
    %cst_30 = arith.constant 0.000000e+00 : f32
    %46 = vector.shape_cast %2 : vector<1x16xi1> to vector<1x16xi1>
    %47 = vector.broadcast %46 : vector<1x16xi1> to vector<8x16xi1>
    %48 = vector.broadcast %cst_30 : f32 to vector<8x16xf32>
    %49 = arith.select %47, %48, %45 : vector<8x16xi1>, vector<8x16xf32>
    %50 = arith.truncf %49 : vector<8x16xf32> to vector<8x16xbf16>
    %cst_31 = arith.constant dense<0.000000e+00> : vector<8x16xf32>
    %51 = tpu.matmul %12, %50, %cst_31 {dimension_numbers = #tpu.dot_dimension_numbers<[1], [0], [0], [1], [0, 0, 1, 1], [], []>} : vector<8x8xbf16>, vector<8x16xbf16>, vector<8x16xf32> -> vector<8x16xf32>
    %52 = arith.addf %44, %51 : vector<8x16xf32>
    %c15_i32_32 = arith.constant 15 : i32
    %53 = tpu.dynamic_rotate %42 by %c15_i32_32 dim 1 : vector<8x16xf32>, i32 -> vector<8x16xf32>
    %cst_33 = arith.constant 0.000000e+00 : f32
    %54 = vector.shape_cast %4 : vector<1x16xi1> to vector<1x16xi1>
    %55 = vector.broadcast %54 : vector<1x16xi1> to vector<8x16xi1>
    %56 = vector.broadcast %cst_33 : f32 to vector<8x16xf32>
    %57 = arith.select %55, %56, %53 : vector<8x16xi1>, vector<8x16xf32>
    %58 = arith.truncf %57 : vector<8x16xf32> to vector<8x16xbf16>
    %cst_34 = arith.constant dense<0.000000e+00> : vector<8x16xf32>
    %59 = tpu.matmul %16, %58, %cst_34 {dimension_numbers = #tpu.dot_dimension_numbers<[1], [0], [0], [1], [0, 0, 1, 1], [], []>} : vector<8x8xbf16>, vector<8x16xbf16>, vector<8x16xf32> -> vector<8x16xf32>
    %60 = arith.addf %52, %59 : vector<8x16xf32>
    %61 = arith.addf %20, %60 : vector<8x16xf32>
    %62 = vector.broadcast %18 : vector<8x1xf32> to vector<8x16xf32>
    %63 = arith.addf %61, %62 : vector<8x16xf32>
    %cst_35 = arith.constant 0.000000e+00 : f32
    %64 = vector.broadcast %cst_35 : f32 to vector<8x16xf32>
    %65 = arith.maximumf %63, %64 : vector<8x16xf32>
    %c0_36 = arith.constant 0 : index
    %c0_37 = arith.constant 0 : index
    %c0_38 = arith.constant 0 : index
    %66 = vector.load %arg6[%c0_36, %c0_37, %c0_38] : memref<1x8x16xf32, #tpu.memory_space<vmem>>, vector<1x8x16xf32>
    %67 = vector.shape_cast %66 : vector<1x8x16xf32> to vector<8x16xf32>
    %68 = vector.shape_cast %65 : vector<8x16xf32> to vector<1x8x16xf32>
    tpu.vector_store %arg6[%c0_36, %c0_37, %c0_38], %68 {strides = array<i32>} : memref<1x8x16xf32, #tpu.memory_space<vmem>>, vector<1x8x16xf32>,
    return
  }
  func.func @transform_0(%arg0: i32) -> (i32, i32, i32) {
    %c0_i32 = arith.constant 0 : i32
    %c0_i32_0 = arith.constant 0 : i32
    %c0_i32_1 = arith.constant 0 : i32
    return %arg0, %c0_i32, %c0_i32_0 : i32, i32, i32
  }
  func.func @transform_1(%arg0: i32) -> (i32, i32, i32) {
    %c0_i32 = arith.constant 0 : i32
    %c0_i32_0 = arith.constant 0 : i32
    %c0_i32_1 = arith.constant 0 : i32
    %c0_i32_2 = arith.constant 0 : i32
    return %c0_i32, %c0_i32_0, %c0_i32_1 : i32, i32, i32
  }
  func.func @transform_2(%arg0: i32) -> (i32, i32) {
    %c0_i32 = arith.constant 0 : i32
    %c0_i32_0 = arith.constant 0 : i32
    %c0_i32_1 = arith.constant 0 : i32
    return %c0_i32, %c0_i32_0 : i32, i32
  }
  func.func @transform_3(%arg0: i32) -> (i32, i32, i32) {
    %c0_i32 = arith.constant 0 : i32
    %c0_i32_0 = arith.constant 0 : i32
    %c0_i32_1 = arith.constant 0 : i32
    %c0_i32_2 = arith.constant 0 : i32
    return %c0_i32, %c0_i32_0, %c0_i32_1 : i32, i32, i32
  }
  func.func @transform_4(%arg0: i32) -> (i32, i32) {
    %c0_i32 = arith.constant 0 : i32
    %c0_i32_0 = arith.constant 0 : i32
    %c0_i32_1 = arith.constant 0 : i32
    return %c0_i32, %c0_i32_0 : i32, i32
  }
  func.func @transform_5(%arg0: i32) -> (i32, i32, i32) {
    %c0_i32 = arith.constant 0 : i32
    %c0_i32_0 = arith.constant 0 : i32
    %c0_i32_1 = arith.constant 0 : i32
    return %arg0, %c0_i32, %c0_i32_0 : i32, i32, i32
  }
}

</mosaic_0001>

<llo_original>
// kernel: tpu_custom_call.1
$region0: #{tpu_custom_call.1}
  #allocation0 [shape = 'u32[]', space=smem, size = 0x4, offset = 0x4, fixed_abs, tag = 'smem constant byte address 0x4 - core index']
  #allocation1 [shape = 'u32[144,128]{1,0:T(1,128)}', space=vmem, size = 0x12000, scoped, tag = 'internal scratch']
  %s0 = inlined_call_operand.vmem [shape: f32[2,8,16], index: 0, kind: input, shape index: {}]
  %s1 = inlined_call_operand.hbm [shape: bf16[3,8,8], index: 1, kind: input, shape index: {}]
  %s2 = inlined_call_operand.vmem [shape: f32[8,1], index: 2, kind: input, shape index: {}]
  %s3 = inlined_call_operand.vmem [shape: bf16[3,8,8], index: 3, kind: input, shape index: {}]
  %s4 = inlined_call_operand.vmem [shape: f32[8,1], index: 4, kind: input, shape index: {}]
  %s5 = inlined_call_operand.hbm [shape: f32[2,8,16], index: 5, kind: output, shape index: {}]
  %s6 = sld [smem:[#allocation0]]
  $region57: #{tpu_custom_call.1} parent=0
    _
  %s8 = ssub.s32 1, %s6
  %s9 = scalar_select 0, %s8, %s6
  $region1: #{tpu_custom_call.1} parent=0
    #allocation2 [shape = 'u8[6144]{0}', space=vmem, size = 0x1800, scoped, tag = 'input window, operand 1, single buffered']
    #allocation3 [shape = 's32[2]{0}', space=sflag, size = 0x8, scoped, tag = 'scoped memory for tpu_custom_call.1']
    #allocation4 [shape = 's32[2]{0}', space=sflag, size = 0x8, scoped, tag = 'scoped memory for tpu_custom_call.1']
    #allocation5 [shape = 'u8[8192]{0}', space=vmem, size = 0x2000, scoped, tag = 'output window, operand 0']
    %10 = vsyncpa [#allocation3], 0
    %11 = vsyncpa [#allocation4], 0
    %s12 = scalar_lea.sflag [#allocation4], 1
    %13 = vsyncpa %s12, 0
    loop: start=0, step=1, limit=4
    $region2: #{tpu_custom_call.1} parent=1 // loop_pre_header
      _
    $region3: #{tpu_custom_call.1} parent=1 // loop_header
      %s15 = sphi 0, %s19
      %p16 = scmp.ge.s32.totalorder %s15, 4
      %s25 = sphi 0, %s27
      %s28 = sphi 0, %s25
      %s29 = sphi 0, %s28
      %s45 = sphi 0, %s29
      %s49 = sphi 0, %s49
      %s51 = sphi 0, %s49
      %s52 = sphi 0, %s51
      %s66 = sphi 0, %s52
      %s70 = sphi 0, %s70
      %s72 = sphi 0, %s70
      %s73 = sphi 0, %s72
      %s87 = sphi 0, %s73
      %s91 = sphi 0, %s91
      %s93 = sphi 0, %s91
      %s94 = sphi 0, %s93
      %s108 = sphi 0, %s94
      %s112 = sphi 0, %s112
      %s114 = sphi 0, %s112
      %s115 = sphi 0, %s114
      %s129 = sphi 0, %s115
      %s135 = sphi 0, %s137
      %s138 = sphi 0, %s135
      %s139 = sphi 0, %s138
      %s155 = sphi 0, %s139
    $region4: #{tpu_custom_call.1} parent=1 // loop_header_branch
      %18 = sbr.rel (%p16) target = $region8
    $region5: #{tpu_custom_call.1} parent=1 // loop_body
      %s20 = ssub.s32 %s15, 1
      %s21 = ssub.s32 %s15, 2
      %s22 = sadd.s32 %s15, 1
      %s23 = ssub.s32 %s15, %s22
      %p24 = scmp.eq.s32.totalorder %s23, 0
      %s26 = sadd.s32 %s25, 1
      %s27 = scalar_select %p24, %s25, %s26
      %p30 = pneg %p24
      %p31 = scmp.eq.s32.totalorder %s15, 1
      %p32 = por %p30, %p31
      %p33 = scmp.ne.s32.totalorder %s25, %s28
      %p34 = scmp.eq.s32.totalorder %s15, 0
      %p35 = por %p33, %p34
      %p36 = scmp.ne.s32.totalorder %s25, %s28
      %p37 = scmp.eq.s32.totalorder %s20, 1
      %p38 = por %p36, %p37
      %p39 = scmp.ne.s32.totalorder %s28, %s29
      %p40 = scmp.eq.s32.totalorder %s20, 0
      %p41 = por %p39, %p40
      %p42 = scmp.ne.s32.totalorder %s28, %s29
      %p43 = scmp.eq.s32.totalorder %s21, 1
      %p44 = por %p42, %p43
      %p46 = scmp.ne.s32.totalorder %s29, %s45
      %p47 = scmp.eq.s32.totalorder %s21, 0
      %p48 = por %p46, %p47
      %s50 = sadd.s32 %s49, 1
      %p53 = scmp.eq.s32.totalorder %s15, 1
      %p54 = scmp.ne.s32.totalorder %s49, %s51
      %p55 = scmp.eq.s32.totalorder %s15, 0
      %p56 = por %p54, %p55
      %p57 = scmp.ne.s32.totalorder %s49, %s51
      %p58 = scmp.eq.s32.totalorder %s20, 1
      %p59 = por %p57, %p58
      %p60 = scmp.ne.s32.totalorder %s51, %s52
      %p61 = scmp.eq.s32.totalorder %s20, 0
      %p62 = por %p60, %p61
      %p63 = scmp.ne.s32.totalorder %s51, %s52
      %p64 = scmp.eq.s32.totalorder %s21, 1
      %p65 = por %p63, %p64
      %p67 = scmp.ne.s32.totalorder %s52, %s66
      %p68 = scmp.eq.s32.totalorder %s21, 0
      %p69 = por %p67, %p68
      %s71 = sadd.s32 %s70, 1
      %p74 = scmp.eq.s32.totalorder %s15, 1
      %p75 = scmp.ne.s32.totalorder %s70, %s72
      %p76 = scmp.eq.s32.totalorder %s15, 0
      %p77 = por %p75, %p76
      %p78 = scmp.ne.s32.totalorder %s70, %s72
      %p79 = scmp.eq.s32.totalorder %s20, 1
      %p80 = por %p78, %p79
      %p81 = scmp.ne.s32.totalorder %s72, %s73
      %p82 = scmp.eq.s32.totalorder %s20, 0
      %p83 = por %p81, %p82
      %p84 = scmp.ne.s32.totalorder %s72, %s73
      %p85 = scmp.eq.s32.totalorder %s21, 1
      %p86 = por %p84, %p85
      %p88 = scmp.ne.s32.totalorder %s73, %s87
      %p89 = scmp.eq.s32.totalorder %s21, 0
      %p90 = por %p88, %p89
      %s92 = sadd.s32 %s91, 1
      %p95 = scmp.eq.s32.totalorder %s15, 1
      %p96 = scmp.ne.s32.totalorder %s91, %s93
      %p97 = scmp.eq.s32.totalorder %s15, 0
      %p98 = por %p96, %p97
      %p99 = scmp.ne.s32.totalorder %s91, %s93
      %p100 = scmp.eq.s32.totalorder %s20, 1
      %p101 = por %p99, %p100
      %p102 = scmp.ne.s32.totalorder %s93, %s94
      %p103 = scmp.eq.s32.totalorder %s20, 0
      %p104 = por %p102, %p103
      %p105 = scmp.ne.s32.totalorder %s93, %s94
      %p106 = scmp.eq.s32.totalorder %s21, 1
      %p107 = por %p105, %p106
      %p109 = scmp.ne.s32.totalorder %s94, %s108
      %p110 = scmp.eq.s32.totalorder %s21, 0
      %p111 = por %p109, %p110
      %s113 = sadd.s32 %s112, 1
      %p116 = scmp.eq.s32.totalorder %s15, 1
      %p117 = scmp.ne.s32.totalorder %s112, %s114
      %p118 = scmp.eq.s32.totalorder %s15, 0
      %p119 = por %p117, %p118
      %p120 = scmp.ne.s32.totalorder %s112, %s114
      %p121 = scmp.eq.s32.totalorder %s20, 1
      %p122 = por %p120, %p121
      %p123 = scmp.ne.s32.totalorder %s114, %s115
      %p124 = scmp.eq.s32.totalorder %s20, 0
      %p125 = por %p123, %p124
      %p126 = scmp.ne.s32.totalorder %s114, %s115
      %p127 = scmp.eq.s32.totalorder %s21, 1
      %p128 = por %p126, %p127
      %p130 = scmp.ne.s32.totalorder %s115, %s129
      %p131 = scmp.eq.s32.totalorder %s21, 0
      %p132 = por %p130, %p131
      %s133 = ssub.s32 %s15, %s22
      %p134 = scmp.eq.s32.totalorder %s133, 0
      %s136 = sadd.s32 %s135, 1
      %s137 = scalar_select %p134, %s135, %s136
      %p140 = pneg %p134
      %p141 = scmp.eq.s32.totalorder %s15, 1
      %p142 = por %p140, %p141
      %p143 = scmp.ne.s32.totalorder %s135, %s138
      %p144 = scmp.eq.s32.totalorder %s15, 0
      %p145 = por %p143, %p144
      %p146 = scmp.ne.s32.totalorder %s135, %s138
      %p147 = scmp.eq.s32.totalorder %s20, 1
      %p148 = por %p146, %p147
      %p149 = scmp.ne.s32.totalorder %s138, %s139
      %p150 = scmp.eq.s32.totalorder %s20, 0
      %p151 = por %p149, %p150
      %p152 = scmp.ne.s32.totalorder %s138, %s139
      %p153 = scmp.eq.s32.totalorder %s21, 1
      %p154 = por %p152, %p153
      %p156 = scmp.ne.s32.totalorder %s139, %s155
      %p157 = scmp.eq.s32.totalorder %s21, 0
      %p158 = por %p156, %p157
      %p159 = scmp.le.s32.totalorder 1, %s15
      %p160 = scmp.lt.s32.totalorder %s15, 3
      %p161 = pnand %p159, %p160
      %p162 = pneg %p161
      // Predicated region
      $region9: #{tpu_custom_call.1} parent=5 // pred_check
        _
      $region10: #{tpu_custom_call.1} parent=5 // pred_check_branch
        %164 = sbr.rel (%p161) target = $region12
      $region11: #{tpu_custom_call.1} parent=5 // pred_region
        %s165 = ssub.s32 %s15, 1
        // Predicated region
        $region13: #{tpu_custom_call.1} parent=11 // pred_check
          %p166 = pneg %p62
        $region14: #{tpu_custom_call.1} parent=11 // pred_check_branch
          %168 = sbr.rel (%p166) target = $region16
        $region15: #{tpu_custom_call.1} parent=11 // pred_region
          %s170 = ssub.s32 192, 192
          %171 = vsyncadd [#allocation3], %s170
          %s172 = sshll.u32 [#allocation2], 4
          %s173 = int_to_ptr.vmem [resolvable:$true] %s172
          %178 = dma.hbm_to_vmem [thread:$0]  %s1, 192, %s173, [#allocation3], 64, 64, 4
        $region16: #{tpu_custom_call.1} parent=11 // pred_fallthru
          _
        // Predicated region
        $region17: #{tpu_custom_call.1} parent=11 // pred_check
          %p179 = pneg %p83
        $region18: #{tpu_custom_call.1} parent=11 // pred_check_branch
          %181 = sbr.rel (%p179) target = $region20
        $region19: #{tpu_custom_call.1} parent=11 // pred_region
          _
        $region20: #{tpu_custom_call.1} parent=11 // pred_fallthru
          _
        // Predicated region
        $region21: #{tpu_custom_call.1} parent=11 // pred_check
          %p182 = pneg %p104
        $region22: #{tpu_custom_call.1} parent=11 // pred_check_branch
          %184 = sbr.rel (%p182) target = $region24
        $region23: #{tpu_custom_call.1} parent=11 // pred_region
          _
        $region24: #{tpu_custom_call.1} parent=11 // pred_fallthru
          _
        // Predicated region
        $region25: #{tpu_custom_call.1} parent=11 // pred_check
          %p185 = pneg %p125
        $region26: #{tpu_custom_call.1} parent=11 // pred_check_branch
          %187 = sbr.rel (%p185) target = $region28
        $region27: #{tpu_custom_call.1} parent=11 // pred_region
          _
        $region28: #{tpu_custom_call.1} parent=11 // pred_fallthru
          _
      $region12: #{tpu_custom_call.1} parent=5 // pred_fallthru
        _
      %p188 = scmp.lt.s32.totalorder %s15, 2
      // Predicated region
      $region29: #{tpu_custom_call.1} parent=5 // pred_check
        %p189 = pneg %p188
      $region30: #{tpu_custom_call.1} parent=5 // pred_check_branch
        %191 = sbr.rel (%p189) target = $region32
      $region31: #{tpu_custom_call.1} parent=5 // pred_region
        // Predicated region
        $region33: #{tpu_custom_call.1} parent=31 // pred_check
          %p192 = pneg %p35
        $region34: #{tpu_custom_call.1} parent=31 // pred_check_branch
          %194 = sbr.rel (%p192) target = $region36
        $region35: #{tpu_custom_call.1} parent=31 // pred_region
          %p195 = scmp.lt.s32.totalorder %s15, 1
          %s196 = scalar_select %p195, %s15, 1
          %s197 = smul.addr %s196, 8
          %s198 = scalar_lea.vmem %s0, %s197
        $region36: #{tpu_custom_call.1} parent=31 // pred_fallthru
          _
      $region32: #{tpu_custom_call.1} parent=5 // pred_fallthru
        _
      %p199 = scmp.le.s32.totalorder 1, %s15
      %p200 = scmp.lt.s32.totalorder %s15, 3
      %p201 = pnand %p199, %p200
      %p202 = pneg %p201
      // Predicated region
      $region37: #{tpu_custom_call.1} parent=5 // pred_check
        _
      $region38: #{tpu_custom_call.1} parent=5 // pred_check_branch
        %204 = sbr.rel (%p201) target = $region40
      $region39: #{tpu_custom_call.1} parent=5 // pred_region
        %s205 = ssub.s32 %s15, 1
        // Predicated region
        $region41: #{tpu_custom_call.1} parent=39 // pred_check
          %p206 = pneg %p62
        $region42: #{tpu_custom_call.1} parent=39 // pred_check_branch
          %208 = sbr.rel (%p206) target = $region44
        $region43: #{tpu_custom_call.1} parent=39 // pred_region
          %209 = dma.done [#allocation3], 192
        $region44: #{tpu_custom_call.1} parent=39 // pred_fallthru
          _
        %p210 = scmp.lt.s32.totalorder %s20, 1
        %s211 = scalar_select %p210, %s20, 1
        %s212 = smul.addr %s211, 8
        %s213 = scalar_lea.vmem %s0, %s212
        %p214 = pneg %p41
        %p215 = pneg %p38
        %p216 = pneg %p62
        %p217 = pneg %p59
        %p218 = pneg %p83
        %p219 = pneg %p80
        %p220 = pneg %p104
        %p221 = pneg %p101
        %p222 = pneg %p125
        %p223 = pneg %p122
        %p224 = pneg %p151
        %p225 = pneg %p148
        %s226 = sand.u32 %s138, 1
        %s227 = scalar_lea.sflag [#allocation4], %s226
        %s228 = sand.u32 %s138, 1
        %s229 = smul.addr %s228, 8
        %s230 = scalar_lea.vmem [#allocation5], %s229
        %p231 = scmp.lt.s32.totalorder %s20, 1
        %s232 = scalar_select %p231, %s20, 1
        %s233 = smul.addr %s232, 8
        %s234 = scalar_lea.vmem %s0, %s233
        %v236 = vlaneseq
        %v237 = vand.u32 %v236, 127
        %vm238 = vcmp.eq.s32.totalorder %v237, 0
        %vm239 = vcmp.eq.s32.totalorder %v237, 15
        %v240 = vld [vmem:[#allocation2] sm:$0xf]
        %s241 = scalar_lea.vmem [#allocation2], 4
        %v242 = vld [vmem:[%s241] sm:$0xf]
        %s243 = scalar_lea.vmem [#allocation2], 8
        %v244 = vld [vmem:[%s243] sm:$0xf]
        %v245 = vld [vmem:[%s3] sm:$0xf]
        %s246 = scalar_lea.vmem %s3, 4
        %v247 = vld [vmem:[%s246] sm:$0xf]
        %s248 = scalar_lea.vmem %s3, 8
        %v249 = vld [vmem:[%s248] sm:$0xf]
        %v250 = vld [vmem:[%s2] sm:$0xff]
        %v251 = vld [vmem:[%s4] sm:$0xff]
        %v252 = vld [vmem:[%s234] sm:$0xff]
        %v253 = vpack.c.bf16 %v252, %v252
        %vm254 = vcmask 1047680
        %255 = vrot.lane.b32.xlu0 %v252, 16
        %v256 = vpop.permute.xlu0 %255
        %v257 = vsel %vm254, %v256, %v252
        %258 = vrot.lane.b32.xlu0 %v257, 16
        %v259 = vpop.permute.xlu0 %258
        %v260 = vsel %vm254, %v259, %v252
        %v261 = vsel %vm238, 1, 0
        %vm262 = vcmp.eq.s32.totalorder %v261, 1
        %264 = vrot.lane.b32.xlu0 %v260, 113
        %v265 = vpop.permute.xlu0 %264
        %v267 = vsel %vm262, 0.0, %v265
        %v268 = vpack.c.bf16 %v267, %v267
        %vm269 = vcmask 64512
        %v271 = vsel %vm269, %v240, 0
        %vm273 = vcmask 1043456
        %v275 = vsel %vm273, %v268, 0
        %277 = vmatprep.subr.bf16.mxu0 0
        %278 = vmatpush1.bf16.msra.mxu0 %v275
        %279 = vmatprep.subr.bf16.mxu0 0
        %280 = vmatpush1.bf16.msra.mxu0 0
        %281 = vmatprep.subr.bf16.mxu0 0
        %282 = vmatpush1.bf16.msra.mxu0 0
        %283 = vmatprep.subr.bf16.mxu0 0
        %284 = vmatpush1.bf16.msra.mxu0 0
        %285 = vmatprep.subr.bf16.mxu0 0
        %286 = vmatpush1.bf16.msra.mxu0 0
        %287 = vmatprep.subr.bf16.mxu0 0
        %288 = vmatpush1.bf16.msra.mxu0 0
        %289 = vmatprep.subr.bf16.mxu0 0
        %290 = vmatpush1.bf16.msra.mxu0 0
        %291 = vmatprep.subr.bf16.mxu0 0
        %292 = vmatpush1.bf16.msra.mxu0 0
        %293 = vmatprep.subr.bf16.mxu0 0
        %294 = vmatpush1.bf16.msra.mxu0 0
        %295 = vmatprep.subr.bf16.mxu0 0
        %296 = vmatpush1.bf16.msra.mxu0 0
        %297 = vmatprep.subr.bf16.mxu0 0
        %298 = vmatpush1.bf16.msra.mxu0 0
        %299 = vmatprep.subr.bf16.mxu0 0
        %300 = vmatpush1.bf16.msra.mxu0 0
        %301 = vmatprep.subr.bf16.mxu0 0
        %302 = vmatpush1.bf16.msra.mxu0 0
        %303 = vmatprep.subr.bf16.mxu0 0
        %304 = vmatpush1.bf16.msra.mxu0 0
        %305 = vmatprep.subr.bf16.mxu0 0
        %306 = vmatpush1.bf16.msra.mxu0 0
        %307 = vmatprep.subr.bf16.mxu0 0
        %308 = vmatpush1.bf16.msra.mxu0 0
        %309 = vmatprep.mubr.bf16.mxu0 0
        %310 = vmatmul.mubr.bf16.gmra.mrb[0].mxu0 %v271
        %v311 = vpop.f32.mrb[0].mxu0
        %v312 = vadd.f32 0.0, %v311
        %v313 = vpop.f32.mrb[0].mxu0
        %v314 = vpop.f32.mrb[0].mxu0
        %v315 = vpop.f32.mrb[0].mxu0
        %316 = vdwg.mxu0
        %v318 = vsel %vm269, %v242, 0
        %v321 = vsel %vm273, %v253, 0
        %323 = vmatprep.subr.bf16.mxu0 0
        %324 = vmatpush1.bf16.msra.mxu0 %v321
        %325 = vmatprep.subr.bf16.mxu0 0
        %326 = vmatpush1.bf16.msra.mxu0 0
        %327 = vmatprep.subr.bf16.mxu0 0
        %328 = vmatpush1.bf16.msra.mxu0 0
        %329 = vmatprep.subr.bf16.mxu0 0
        %330 = vmatpush1.bf16.msra.mxu0 0
        %331 = vmatprep.subr.bf16.mxu0 0
        %332 = vmatpush1.bf16.msra.mxu0 0
        %333 = vmatprep.subr.bf16.mxu0 0
        %334 = vmatpush1.bf16.msra.mxu0 0
        %335 = vmatprep.subr.bf16.mxu0 0
        %336 = vmatpush1.bf16.msra.mxu0 0
        %337 = vmatprep.subr.bf16.mxu0 0
        %338 = vmatpush1.bf16.msra.mxu0 0
        %339 = vmatprep.subr.bf16.mxu0 0
        %340 = vmatpush1.bf16.msra.mxu0 0
        %341 = vmatprep.subr.bf16.mxu0 0
        %342 = vmatpush1.bf16.msra.mxu0 0
        %343 = vmatprep.subr.bf16.mxu0 0
        %344 = vmatpush1.bf16.msra.mxu0 0
        %345 = vmatprep.subr.bf16.mxu0 0
        %346 = vmatpush1.bf16.msra.mxu0 0
        %347 = vmatprep.subr.bf16.mxu0 0
        %348 = vmatpush1.bf16.msra.mxu0 0
        %349 = vmatprep.subr.bf16.mxu0 0
        %350 = vmatpush1.bf16.msra.mxu0 0
        %351 = vmatprep.subr.bf16.mxu0 0
        %352 = vmatpush1.bf16.msra.mxu0 0
        %353 = vmatprep.subr.bf16.mxu0 0
        %354 = vmatpush1.bf16.msra.mxu0 0
        %355 = vmatprep.mubr.bf16.mxu0 0
        %356 = vmatmul.mubr.bf16.gmra.mrb[0].mxu0 %v318
        %v357 = vpop.f32.mrb[0].mxu0
        %v358 = vadd.f32 %v312, %v357
        %v359 = vpop.f32.mrb[0].mxu0
        %v360 = vpop.f32.mrb[0].mxu0
        %v361 = vpop.f32.mrb[0].mxu0
        %362 = vdwg.mxu0
        %v363 = vsel %vm239, 1, 0
        %vm364 = vcmp.eq.s32.totalorder %v363, 1
        %365 = vrot.lane.b32.xlu0 %v260, 127
        %v366 = vpop.permute.xlu0 %365
        %v368 = vsel %vm364, 0.0, %v366
        %v369 = vpack.c.bf16 %v368, %v368
        %v371 = vsel %vm269, %v244, 0
        %v374 = vsel %vm273, %v369, 0
        %376 = vmatprep.subr.bf16.mxu0 0
        %377 = vmatpush1.bf16.msra.mxu0 %v374
        %378 = vmatprep.subr.bf16.mxu0 0
        %379 = vmatpush1.bf16.msra.mxu0 0
        %380 = vmatprep.subr.bf16.mxu0 0
        %381 = vmatpush1.bf16.msra.mxu0 0
        %382 = vmatprep.subr.bf16.mxu0 0
        %383 = vmatpush1.bf16.msra.mxu0 0
        %384 = vmatprep.subr.bf16.mxu0 0
        %385 = vmatpush1.bf16.msra.mxu0 0
        %386 = vmatprep.subr.bf16.mxu0 0
        %387 = vmatpush1.bf16.msra.mxu0 0
        %388 = vmatprep.subr.bf16.mxu0 0
        %389 = vmatpush1.bf16.msra.mxu0 0
        %390 = vmatprep.subr.bf16.mxu0 0
        %391 = vmatpush1.bf16.msra.mxu0 0
        %392 = vmatprep.subr.bf16.mxu0 0
        %393 = vmatpush1.bf16.msra.mxu0 0
        %394 = vmatprep.subr.bf16.mxu0 0
        %395 = vmatpush1.bf16.msra.mxu0 0
        %396 = vmatprep.subr.bf16.mxu0 0
        %397 = vmatpush1.bf16.msra.mxu0 0
        %398 = vmatprep.subr.bf16.mxu0 0
        %399 = vmatpush1.bf16.msra.mxu0 0
        %400 = vmatprep.subr.bf16.mxu0 0
        %401 = vmatpush1.bf16.msra.mxu0 0
        %402 = vmatprep.subr.bf16.mxu0 0
        %403 = vmatpush1.bf16.msra.mxu0 0
        %404 = vmatprep.subr.bf16.mxu0 0
        %405 = vmatpush1.bf16.msra.mxu0 0
        %406 = vmatprep.subr.bf16.mxu0 0
        %407 = vmatpush1.bf16.msra.mxu0 0
        %408 = vmatprep.mubr.bf16.mxu0 0
        %409 = vmatmul.mubr.bf16.gmra.mrb[0].mxu0 %v371
        %v410 = vpop.f32.mrb[0].mxu0
        %v411 = vadd.f32 0.0, %v410
        %v412 = vpop.f32.mrb[0].mxu0
        %v413 = vpop.f32.mrb[0].mxu0
        %v414 = vpop.f32.mrb[0].mxu0
        %415 = vdwg.mxu0
        %v416 = vadd.f32 %v358, %v411
        %418 = vset.pattern.permute.xlu0 0
        %419 = vperm.xlu0 %418, %v250
        %v420 = vpop.permute.xlu0 %419
        %v422 = vadd.f32 %v416, %v420
        %v423 = vmax.f32 %v422, 0.0
        %v424 = vpack.c.bf16 %v423, %v423
        %425 = vrot.lane.b32.xlu0 %v423, 16
        %v426 = vpop.permute.xlu0 %425
        %v427 = vsel %vm254, %v426, %v423
        %428 = vrot.lane.b32.xlu0 %v427, 16
        %v429 = vpop.permute.xlu0 %428
        %v430 = vsel %vm254, %v429, %v423
        %432 = vrot.lane.b32.xlu0 %v430, 113
        %v433 = vpop.permute.xlu0 %432
        %v435 = vsel %vm262, 0.0, %v433
        %v436 = vpack.c.bf16 %v435, %v435
        %v438 = vsel %vm269, %v245, 0
        %v441 = vsel %vm273, %v436, 0
        %443 = vmatprep.subr.bf16.mxu0 0
        %444 = vmatpush1.bf16.msra.mxu0 %v441
        %445 = vmatprep.subr.bf16.mxu0 0
        %446 = vmatpush1.bf16.msra.mxu0 0
        %447 = vmatprep.subr.bf16.mxu0 0
        %448 = vmatpush1.bf16.msra.mxu0 0
        %449 = vmatprep.subr.bf16.mxu0 0
        %450 = vmatpush1.bf16.msra.mxu0 0
        %451 = vmatprep.subr.bf16.mxu0 0
        %452 = vmatpush1.bf16.msra.mxu0 0
        %453 = vmatprep.subr.bf16.mxu0 0
        %454 = vmatpush1.bf16.msra.mxu0 0
        %455 = vmatprep.subr.bf16.mxu0 0
        %456 = vmatpush1.bf16.msra.mxu0 0
        %457 = vmatprep.subr.bf16.mxu0 0
        %458 = vmatpush1.bf16.msra.mxu0 0
        %459 = vmatprep.subr.bf16.mxu0 0
        %460 = vmatpush1.bf16.msra.mxu0 0
        %461 = vmatprep.subr.bf16.mxu0 0
        %462 = vmatpush1.bf16.msra.mxu0 0
        %463 = vmatprep.subr.bf16.mxu0 0
        %464 = vmatpush1.bf16.msra.mxu0 0
        %465 = vmatprep.subr.bf16.mxu0 0
        %466 = vmatpush1.bf16.msra.mxu0 0
        %467 = vmatprep.subr.bf16.mxu0 0
        %468 = vmatpush1.bf16.msra.mxu0 0
        %469 = vmatprep.subr.bf16.mxu0 0
        %470 = vmatpush1.bf16.msra.mxu0 0
        %471 = vmatprep.subr.bf16.mxu0 0
        %472 = vmatpush1.bf16.msra.mxu0 0
        %473 = vmatprep.subr.bf16.mxu0 0
        %474 = vmatpush1.bf16.msra.mxu0 0
        %475 = vmatprep.mubr.bf16.mxu0 0
        %476 = vmatmul.mubr.bf16.gmra.mrb[0].mxu0 %v438
        %v477 = vpop.f32.mrb[0].mxu0
        %v478 = vadd.f32 0.0, %v477
        %v479 = vpop.f32.mrb[0].mxu0
        %v480 = vpop.f32.mrb[0].mxu0
        %v481 = vpop.f32.mrb[0].mxu0
        %482 = vdwg.mxu0
        %v484 = vsel %vm269, %v247, 0
        %v487 = vsel %vm273, %v424, 0
        %489 = vmatprep.subr.bf16.mxu0 0
        %490 = vmatpush1.bf16.msra.mxu0 %v487
        %491 = vmatprep.subr.bf16.mxu0 0
        %492 = vmatpush1.bf16.msra.mxu0 0
        %493 = vmatprep.subr.bf16.mxu0 0
        %494 = vmatpush1.bf16.msra.mxu0 0
        %495 = vmatprep.subr.bf16.mxu0 0
        %496 = vmatpush1.bf16.msra.mxu0 0
        %497 = vmatprep.subr.bf16.mxu0 0
        %498 = vmatpush1.bf16.msra.mxu0 0
        %499 = vmatprep.subr.bf16.mxu0 0
        %500 = vmatpush1.bf16.msra.mxu0 0
        %501 = vmatprep.subr.bf16.mxu0 0
        %502 = vmatpush1.bf16.msra.mxu0 0
        %503 = vmatprep.subr.bf16.mxu0 0
        %504 = vmatpush1.bf16.msra.mxu0 0
        %505 = vmatprep.subr.bf16.mxu0 0
        %506 = vmatpush1.bf16.msra.mxu0 0
        %507 = vmatprep.subr.bf16.mxu0 0
        %508 = vmatpush1.bf16.msra.mxu0 0
        %509 = vmatprep.subr.bf16.mxu0 0
        %510 = vmatpush1.bf16.msra.mxu0 0
        %511 = vmatprep.subr.bf16.mxu0 0
        %512 = vmatpush1.bf16.msra.mxu0 0
        %513 = vmatprep.subr.bf16.mxu0 0
        %514 = vmatpush1.bf16.msra.mxu0 0
        %515 = vmatprep.subr.bf16.mxu0 0
        %516 = vmatpush1.bf16.msra.mxu0 0
        %517 = vmatprep.subr.bf16.mxu0 0
        %518 = vmatpush1.bf16.msra.mxu0 0
        %519 = vmatprep.subr.bf16.mxu0 0
        %520 = vmatpush1.bf16.msra.mxu0 0
        %521 = vmatprep.mubr.bf16.mxu0 0
        %522 = vmatmul.mubr.bf16.gmra.mrb[0].mxu0 %v484
        %v523 = vpop.f32.mrb[0].mxu0
        %v524 = vadd.f32 %v478, %v523
        %v525 = vpop.f32.mrb[0].mxu0
        %v526 = vpop.f32.mrb[0].mxu0
        %v527 = vpop.f32.mrb[0].mxu0
        %528 = vdwg.mxu0
        %529 = vrot.lane.b32.xlu0 %v430, 127
        %v530 = vpop.permute.xlu0 %529
        %v532 = vsel %vm364, 0.0, %v530
        %v533 = vpack.c.bf16 %v532, %v532
        %v535 = vsel %vm269, %v249, 0
        %v538 = vsel %vm273, %v533, 0
        %540 = vmatprep.subr.bf16.mxu0 0
        %541 = vmatpush1.bf16.msra.mxu0 %v538
        %542 = vmatprep.subr.bf16.mxu0 0
        %543 = vmatpush1.bf16.msra.mxu0 0
        %544 = vmatprep.subr.bf16.mxu0 0
        %545 = vmatpush1.bf16.msra.mxu0 0
        %546 = vmatprep.subr.bf16.mxu0 0
        %547 = vmatpush1.bf16.msra.mxu0 0
        %548 = vmatprep.subr.bf16.mxu0 0
        %549 = vmatpush1.bf16.msra.mxu0 0
        %550 = vmatprep.subr.bf16.mxu0 0
        %551 = vmatpush1.bf16.msra.mxu0 0
        %552 = vmatprep.subr.bf16.mxu0 0
        %553 = vmatpush1.bf16.msra.mxu0 0
        %554 = vmatprep.subr.bf16.mxu0 0
        %555 = vmatpush1.bf16.msra.mxu0 0
        %556 = vmatprep.subr.bf16.mxu0 0
        %557 = vmatpush1.bf16.msra.mxu0 0
        %558 = vmatprep.subr.bf16.mxu0 0
        %559 = vmatpush1.bf16.msra.mxu0 0
        %560 = vmatprep.subr.bf16.mxu0 0
        %561 = vmatpush1.bf16.msra.mxu0 0
        %562 = vmatprep.subr.bf16.mxu0 0
        %563 = vmatpush1.bf16.msra.mxu0 0
        %564 = vmatprep.subr.bf16.mxu0 0
        %565 = vmatpush1.bf16.msra.mxu0 0
        %566 = vmatprep.subr.bf16.mxu0 0
        %567 = vmatpush1.bf16.msra.mxu0 0
        %568 = vmatprep.subr.bf16.mxu0 0
        %569 = vmatpush1.bf16.msra.mxu0 0
        %570 = vmatprep.subr.bf16.mxu0 0
        %571 = vmatpush1.bf16.msra.mxu0 0
        %572 = vmatprep.mubr.bf16.mxu0 0
        %573 = vmatmul.mubr.bf16.gmra.mrb[0].mxu0 %v535
        %v574 = vpop.f32.mrb[0].mxu0
        %v575 = vadd.f32 0.0, %v574
        %v576 = vpop.f32.mrb[0].mxu0
        %v577 = vpop.f32.mrb[0].mxu0
        %v578 = vpop.f32.mrb[0].mxu0
        %579 = vdwg.mxu0
        %v580 = vadd.f32 %v524, %v575
        %v581 = vadd.f32 %v252, %v580
        %583 = vset.pattern.permute.xlu0 0
        %584 = vperm.xlu0 %583, %v251
        %v585 = vpop.permute.xlu0 %584
        %v587 = vadd.f32 %v581, %v585
        %v588 = vmax.f32 %v587, 0.0
        %vm589 = vcmask 130048
        %590 = vst.msk [vmem:[%s230] sm:$0xff] %vm589, %v588
        %s591 = sand.u32 %s138, 1
        %s592 = scalar_lea.sflag [#allocation4], %s591
        %s593 = sand.u32 %s138, 1
        %s594 = smul.addr %s593, 8
        %s595 = scalar_lea.vmem [#allocation5], %s594
        // Predicated region
        $region45: #{tpu_custom_call.1} parent=39 // pred_check
          %p596 = pneg %p148
        $region46: #{tpu_custom_call.1} parent=39 // pred_check_branch
          %598 = sbr.rel (%p596) target = $region48
        $region47: #{tpu_custom_call.1} parent=39 // pred_region
          %s600 = ssub.s32 128, 128
          %601 = vsyncadd %s592, %s600
          %s602 = smul.addr %s20, 128
          %s603 = scalar_lea.hbm %s5, %s602
          %s605 = sshll.u32 %s595, 4
          %s606 = int_to_ptr.vmem [resolvable:$true] %s605
          %608 = dma.vmem_to_hbm [thread:$0]  %s606, 128, %s603, %s592
        $region48: #{tpu_custom_call.1} parent=39 // pred_fallthru
          _
      $region40: #{tpu_custom_call.1} parent=5 // pred_fallthru
        _
      %p609 = scmp.le.s32.totalorder 2, %s15
      // Predicated region
      $region49: #{tpu_custom_call.1} parent=5 // pred_check
        %p610 = pneg %p609
      $region50: #{tpu_custom_call.1} parent=5 // pred_check_branch
        %612 = sbr.rel (%p610) target = $region52
      $region51: #{tpu_custom_call.1} parent=5 // pred_region
        %s613 = ssub.s32 %s15, 2
        // Predicated region
        $region53: #{tpu_custom_call.1} parent=51 // pred_check
          %p614 = pneg %p154
        $region54: #{tpu_custom_call.1} parent=51 // pred_check_branch
          %616 = sbr.rel (%p614) target = $region56
        $region55: #{tpu_custom_call.1} parent=51 // pred_region
          %s617 = sand.u32 %s139, 1
          %s618 = scalar_lea.sflag [#allocation4], %s617
          %s619 = sand.u32 %s139, 1
          %s620 = smul.addr %s619, 8
          %s621 = scalar_lea.vmem [#allocation5], %s620
          %622 = dma.done %s618, 128
        $region56: #{tpu_custom_call.1} parent=51 // pred_fallthru
          _
      $region52: #{tpu_custom_call.1} parent=5 // pred_fallthru
        _
    $region6: #{tpu_custom_call.1} parent=1 // loop_footer
      %s19 = sadd.s32 1, %s15
    $region7: #{tpu_custom_call.1} parent=1 // loop_footer_branch
      %14 = sbr.rel target = $region3
    $region8: #{tpu_custom_call.1} parent=1 // loop_exit
      _
    %623 = vsyncpa [#allocation3], 1
    %s624 = scalar_lea.sflag [#allocation3], 1
    %625 = vsyncpa %s624, 1
    %626 = vsyncpa [#allocation4], 1
    %s627 = scalar_lea.sflag [#allocation4], 1
    %628 = vsyncpa %s627, 1

</llo_original>
